<compile_context>
chip_gen: v6e
topology: v6e:2x2x1
jax: 0.10.0
libtpu: 0.0.40
codegen_flags: <defaults>
</compile_context>

<pallas_src>
import functools

import jax
import jax.numpy as jnp
from jax.experimental import pallas as pl
from jax.experimental.pallas import tpu as pltpu

EMB_DIM = 32     # args.emb_dim
MAX_ARITY = 6    # fixed in HSimplE.__init__
ARITY = 6        # E.shape[1] in the example (== max_arity)


def _round_up(x, m):
    return ((x + m - 1) // m) * m


def hsimple_kernel(r_ref, e_ref, ms_ref, bs_ref, out_ref, *, emb_dim, max_arity):
    """One batch tile (batch on lanes):
       out[0, b] = sum_d r[d, b] * prod_i (roll_D(E[i, :, b], -sh_i)[d] * ms[i, b] + bs[i, b])
    """
    arity, d_dim = e_ref.shape[0], e_ref.shape[1]
    r = r_ref[...].astype(jnp.float32)        # (D, Bt)
    ms = ms_ref[...].astype(jnp.float32)      # (A, Bt) -- one dense load per tile
    bs = bs_ref[...].astype(jnp.float32)

    x = None
    for i in range(arity):                    # static unroll, arity == 6
        # torch: shift(v, sh) = cat(v[:, sh:], v[:, :sh]) == roll(v, -sh) along D.
        # The '% emb_dim' matches torch exactly here: for i == max_arity - 1 the torch
        # shift equals emb_dim, which is the identity shift (v[:, emb_dim:] is empty).
        sh = int((i + 1) * emb_dim / max_arity) % emb_dim
        v = e_ref[i, :, :].astype(jnp.float32)            # (D, Bt)
        if sh != 0:
            # roll by -sh along the sublane (D) axis, expressed as a positive roll (XLU).
            v = pltpu.roll(v, shift=(d_dim - sh) % d_dim, axis=0)
        e = v * ms[i:i + 1, :] + bs[i:i + 1, :]           # broadcast across sublanes
        x = e if x is None else x * e

    x = x * r
    # TODO(synk): hidden_drop (Dropout p=0.2) is identity in eval mode; training-mode
    # stochastic dropout (pltpu.prng_*) not implemented here.
    out_ref[...] = jnp.sum(x, axis=0, keepdims=True).astype(out_ref.dtype)  # (1, Bt)


def hsimple_forward(r, E, ms, bs, *, emb_dim=EMB_DIM, max_arity=MAX_ARITY, block_b=512):
    B, A, D = E.shape
    assert D == emb_dim and r.shape == (B, D) and ms.shape == (B, A) and bs.shape == (B, A)

    # Lane-dense batch tiles: multiples of 128, clamped near B so small batches give a
    # single full block. Large blocks amortize the ~0.35us/grid-step overhead; with big
    # batches the grid keeps >1 "parallel" step so v7x megacore can split the work.
    block_b = _round_up(min(block_b, B), 128)
    b_pad = _round_up(B, block_b)
    pad = b_pad - B
    if pad:
        r = jnp.pad(r, ((0, pad), (0, 0)))
        E = jnp.pad(E, ((0, pad), (0, 0), (0, 0)))
        ms = jnp.pad(ms, ((0, pad), (0, 0)))
        bs = jnp.pad(bs, ((0, pad), (0, 0)))

    # Layout plumbing (not compute hoisting): put batch on the lane (last) axis.
    r_t = r.T                          # (D, Bp)
    e_t = jnp.transpose(E, (1, 2, 0))  # (A, D, Bp)
    ms_t = ms.T                        # (A, Bp)
    bs_t = bs.T                        # (A, Bp)

    kern = functools.partial(hsimple_kernel, emb_dim=emb_dim, max_arity=max_arity)
    cost = pl.CostEstimate(
        flops=b_pad * D * (3 * A + 2),
        transcendentals=0,
        bytes_accessed=4 * b_pad * (A * D + D + 2 * A + 1),
    )
    out = pl.pallas_call(
        kern,
        out_shape=jax.ShapeDtypeStruct((1, b_pad), r.dtype),
        grid_spec=pltpu.PrefetchScalarGridSpec(
            num_scalar_prefetch=0,
            grid=(b_pad // block_b,),
            in_specs=[
                pl.BlockSpec((D, block_b), lambda i: (0, i)),
                pl.BlockSpec((A, D, block_b), lambda i: (0, 0, i)),
                pl.BlockSpec((A, block_b), lambda i: (0, i)),
                pl.BlockSpec((A, block_b), lambda i: (0, i)),
            ],
            out_specs=pl.BlockSpec((1, block_b), lambda i: (0, i)),
        ),
        compiler_params=pltpu.CompilerParams(dimension_semantics=("parallel",)),
        cost_estimate=cost,
    )(r_t, e_t, ms_t, bs_t)
    return out[0, :B]


def hsimple_reference(r, E, ms, bs, emb_dim=EMB_DIM, max_arity=MAX_ARITY):
    """Pure-JAX replica of the PyTorch forward (eval mode)."""
    B, A, D = E.shape
    x = None
    for i in range(A):
        sh = int((i + 1) * emb_dim / max_arity)
        v = E[:, i]
        v = jnp.concatenate([v[:, sh:], v[:, :sh]], axis=1)
        e = v * ms[:, i][:, None] + bs[:, i][:, None]
        x = e if x is None else x * e
    x = x * r
    return jnp.sum(x, axis=1)


if __name__ == "__main__":
    key = jax.random.PRNGKey(0)
    k_r, k_e, k_m, k_b = jax.random.split(key, 4)

    B = 200  # ragged (non-multiple of 128) to exercise the padding path
    r = jax.random.normal(k_r, (B, EMB_DIM), dtype=jnp.float32)
    E = jax.random.normal(k_e, (B, ARITY, EMB_DIM), dtype=jnp.float32)
    ms = jax.random.normal(k_m, (B, ARITY), dtype=jnp.float32)
    bs = jax.random.normal(k_b, (B, ARITY), dtype=jnp.float32)

    # block_b=128 -> 2 grid steps at this small size (exercises tiling + padding).
    out = hsimple_forward(r, E, ms, bs, block_b=128)
    out = jax.block_until_ready(out)

    ref = hsimple_reference(r, E, ms, bs)
    assert out.shape == (B,)
    assert jnp.allclose(out, ref, rtol=1e-5, atol=1e-4), (out, ref)

    print("KERNEL_OK")
</pallas_src>

<mosaic_0001>
module attributes {stable_mosaic.version = 11 : i64} {
  func.func @hsimple_kernel(%arg0: i32, %arg1: memref<32x128xf32, #tpu.memory_space<vmem>>, %arg2: memref<6x32x128xf32, #tpu.memory_space<vmem>>, %arg3: memref<6x128xf32, #tpu.memory_space<vmem>>, %arg4: memref<6x128xf32, #tpu.memory_space<vmem>>, %arg5: memref<1x128xf32, #tpu.memory_space<vmem>>) attributes {dimension_semantics = [#tpu.dimension_semantics<parallel>], iteration_bounds = array<i64: 2>, scalar_prefetch = 0 : i64, scratch_operands = 0 : i64, tpu.core_type = #tpu.core_type<tc>, window_params = [{transform_indices = @transform_0, window_bounds = array<i64: 32, 128>}, {transform_indices = @transform_1, window_bounds = array<i64: 6, 32, 128>}, {transform_indices = @transform_2, window_bounds = array<i64: 6, 128>}, {transform_indices = @transform_3, window_bounds = array<i64: 6, 128>}, {transform_indices = @transform_4, window_bounds = array<i64: 1, 128>}]} {
    %c0 = arith.constant 0 : index
    %c0_0 = arith.constant 0 : index
    %0 = vector.load %arg1[%c0, %c0_0] : memref<32x128xf32, #tpu.memory_space<vmem>>, vector<32x128xf32>
    %c0_1 = arith.constant 0 : index
    %c0_2 = arith.constant 0 : index
    %1 = vector.load %arg3[%c0_1, %c0_2] : memref<6x128xf32, #tpu.memory_space<vmem>>, vector<6x128xf32>
    %c0_3 = arith.constant 0 : index
    %c0_4 = arith.constant 0 : index
    %2 = vector.load %arg4[%c0_3, %c0_4] : memref<6x128xf32, #tpu.memory_space<vmem>>, vector<6x128xf32>
    %c0_5 = arith.constant 0 : index
    %c0_6 = arith.constant 0 : index
    %c0_7 = arith.constant 0 : index
    %3 = vector.load %arg2[%c0_5, %c0_6, %c0_7] : memref<6x32x128xf32, #tpu.memory_space<vmem>>, vector<1x32x128xf32>
    %4 = vector.shape_cast %3 : vector<1x32x128xf32> to vector<32x128xf32>
    %c27_i32 = arith.constant 27 : i32
    %5 = tpu.dynamic_rotate %4 by %c27_i32 dim 0 : vector<32x128xf32>, i32 -> vector<32x128xf32>
    %6 = vector.extract_strided_slice %1 {offsets = [0, 0], sizes = [1, 128], strides = [1, 1]} : vector<6x128xf32> to vector<1x128xf32>
    %7 = vector.broadcast %6 : vector<1x128xf32> to vector<32x128xf32>
    %8 = arith.mulf %5, %7 : vector<32x128xf32>
    %9 = vector.extract_strided_slice %2 {offsets = [0, 0], sizes = [1, 128], strides = [1, 1]} : vector<6x128xf32> to vector<1x128xf32>
    %10 = vector.broadcast %9 : vector<1x128xf32> to vector<32x128xf32>
    %11 = arith.addf %8, %10 : vector<32x128xf32>
    %c1 = arith.constant 1 : index
    %c0_8 = arith.constant 0 : index
    %c0_9 = arith.constant 0 : index
    %12 = vector.load %arg2[%c1, %c0_8, %c0_9] : memref<6x32x128xf32, #tpu.memory_space<vmem>>, vector<1x32x128xf32>
    %13 = vector.shape_cast %12 : vector<1x32x128xf32> to vector<32x128xf32>
    %c22_i32 = arith.constant 22 : i32
    %14 = tpu.dynamic_rotate %13 by %c22_i32 dim 0 : vector<32x128xf32>, i32 -> vector<32x128xf32>
    %15 = vector.extract_strided_slice %1 {offsets = [1, 0], sizes = [1, 128], strides = [1, 1]} : vector<6x128xf32> to vector<1x128xf32>
    %16 = vector.broadcast %15 : vector<1x128xf32> to vector<32x128xf32>
    %17 = arith.mulf %14, %16 : vector<32x128xf32>
    %18 = vector.extract_strided_slice %2 {offsets = [1, 0], sizes = [1, 128], strides = [1, 1]} : vector<6x128xf32> to vector<1x128xf32>
    %19 = vector.broadcast %18 : vector<1x128xf32> to vector<32x128xf32>
    %20 = arith.addf %17, %19 : vector<32x128xf32>
    %21 = arith.mulf %11, %20 : vector<32x128xf32>
    %c2 = arith.constant 2 : index
    %c0_10 = arith.constant 0 : index
    %c0_11 = arith.constant 0 : index
    %22 = vector.load %arg2[%c2, %c0_10, %c0_11] : memref<6x32x128xf32, #tpu.memory_space<vmem>>, vector<1x32x128xf32>
    %23 = vector.shape_cast %22 : vector<1x32x128xf32> to vector<32x128xf32>
    %c16_i32 = arith.constant 16 : i32
    %24 = tpu.dynamic_rotate %23 by %c16_i32 dim 0 : vector<32x128xf32>, i32 -> vector<32x128xf32>
    %25 = vector.extract_strided_slice %1 {offsets = [2, 0], sizes = [1, 128], strides = [1, 1]} : vector<6x128xf32> to vector<1x128xf32>
    %26 = vector.broadcast %25 : vector<1x128xf32> to vector<32x128xf32>
    %27 = arith.mulf %24, %26 : vector<32x128xf32>
    %28 = vector.extract_strided_slice %2 {offsets = [2, 0], sizes = [1, 128], strides = [1, 1]} : vector<6x128xf32> to vector<1x128xf32>
    %29 = vector.broadcast %28 : vector<1x128xf32> to vector<32x128xf32>
    %30 = arith.addf %27, %29 : vector<32x128xf32>
    %31 = arith.mulf %21, %30 : vector<32x128xf32>
    %c3 = arith.constant 3 : index
    %c0_12 = arith.constant 0 : index
    %c0_13 = arith.constant 0 : index
    %32 = vector.load %arg2[%c3, %c0_12, %c0_13] : memref<6x32x128xf32, #tpu.memory_space<vmem>>, vector<1x32x128xf32>
    %33 = vector.shape_cast %32 : vector<1x32x128xf32> to vector<32x128xf32>
    %c11_i32 = arith.constant 11 : i32
    %34 = tpu.dynamic_rotate %33 by %c11_i32 dim 0 : vector<32x128xf32>, i32 -> vector<32x128xf32>
    %35 = vector.extract_strided_slice %1 {offsets = [3, 0], sizes = [1, 128], strides = [1, 1]} : vector<6x128xf32> to vector<1x128xf32>
    %36 = vector.broadcast %35 : vector<1x128xf32> to vector<32x128xf32>
    %37 = arith.mulf %34, %36 : vector<32x128xf32>
    %38 = vector.extract_strided_slice %2 {offsets = [3, 0], sizes = [1, 128], strides = [1, 1]} : vector<6x128xf32> to vector<1x128xf32>
    %39 = vector.broadcast %38 : vector<1x128xf32> to vector<32x128xf32>
    %40 = arith.addf %37, %39 : vector<32x128xf32>
    %41 = arith.mulf %31, %40 : vector<32x128xf32>
    %c4 = arith.constant 4 : index
    %c0_14 = arith.constant 0 : index
    %c0_15 = arith.constant 0 : index
    %42 = vector.load %arg2[%c4, %c0_14, %c0_15] : memref<6x32x128xf32, #tpu.memory_space<vmem>>, vector<1x32x128xf32>
    %43 = vector.shape_cast %42 : vector<1x32x128xf32> to vector<32x128xf32>
    %c6_i32 = arith.constant 6 : i32
    %44 = tpu.dynamic_rotate %43 by %c6_i32 dim 0 : vector<32x128xf32>, i32 -> vector<32x128xf32>
    %45 = vector.extract_strided_slice %1 {offsets = [4, 0], sizes = [1, 128], strides = [1, 1]} : vector<6x128xf32> to vector<1x128xf32>
    %46 = vector.broadcast %45 : vector<1x128xf32> to vector<32x128xf32>
    %47 = arith.mulf %44, %46 : vector<32x128xf32>
    %48 = vector.extract_strided_slice %2 {offsets = [4, 0], sizes = [1, 128], strides = [1, 1]} : vector<6x128xf32> to vector<1x128xf32>
    %49 = vector.broadcast %48 : vector<1x128xf32> to vector<32x128xf32>
    %50 = arith.addf %47, %49 : vector<32x128xf32>
    %51 = arith.mulf %41, %50 : vector<32x128xf32>
    %c5 = arith.constant 5 : index
    %c0_16 = arith.constant 0 : index
    %c0_17 = arith.constant 0 : index
    %52 = vector.load %arg2[%c5, %c0_16, %c0_17] : memref<6x32x128xf32, #tpu.memory_space<vmem>>, vector<1x32x128xf32>
    %53 = vector.shape_cast %52 : vector<1x32x128xf32> to vector<32x128xf32>
    %54 = vector.extract_strided_slice %1 {offsets = [5, 0], sizes = [1, 128], strides = [1, 1]} : vector<6x128xf32> to vector<1x128xf32>
    %55 = vector.broadcast %54 : vector<1x128xf32> to vector<32x128xf32>
    %56 = arith.mulf %53, %55 : vector<32x128xf32>
    %57 = vector.extract_strided_slice %2 {offsets = [5, 0], sizes = [1, 128], strides = [1, 1]} : vector<6x128xf32> to vector<1x128xf32>
    %58 = vector.broadcast %57 : vector<1x128xf32> to vector<32x128xf32>
    %59 = arith.addf %56, %58 : vector<32x128xf32>
    %60 = arith.mulf %51, %59 : vector<32x128xf32>
    %61 = arith.mulf %60, %0 : vector<32x128xf32>
    %cst = arith.constant dense<0.000000e+00> : vector<128xf32>
    %62 = vector.multi_reduction <add>, %61, %cst [0] : vector<32x128xf32> to vector<128xf32>
    %63 = vector.shape_cast %62 : vector<128xf32> to vector<1x128xf32>
    %c0_18 = arith.constant 0 : index
    %c0_19 = arith.constant 0 : index
    %64 = vector.load %arg5[%c0_18, %c0_19] : memref<1x128xf32, #tpu.memory_space<vmem>>, vector<1x128xf32>
    tpu.vector_store %arg5[%c0_18, %c0_19], %63 {strides = array<i32>} : memref<1x128xf32, #tpu.memory_space<vmem>>, vector<1x128xf32>,
    return
  }
  func.func @transform_0(%arg0: i32) -> (i32, i32) {
    %c0_i32 = arith.constant 0 : i32
    %c0_i32_0 = arith.constant 0 : i32
    return %c0_i32, %arg0 : i32, i32
  }
  func.func @transform_1(%arg0: i32) -> (i32, i32, i32) {
    %c0_i32 = arith.constant 0 : i32
    %c0_i32_0 = arith.constant 0 : i32
    %c0_i32_1 = arith.constant 0 : i32
    return %c0_i32, %c0_i32_0, %arg0 : i32, i32, i32
  }
  func.func @transform_2(%arg0: i32) -> (i32, i32) {
    %c0_i32 = arith.constant 0 : i32
    %c0_i32_0 = arith.constant 0 : i32
    return %c0_i32, %arg0 : i32, i32
  }
  func.func @transform_3(%arg0: i32) -> (i32, i32) {
    %c0_i32 = arith.constant 0 : i32
    %c0_i32_0 = arith.constant 0 : i32
    return %c0_i32, %arg0 : i32, i32
  }
  func.func @transform_4(%arg0: i32) -> (i32, i32) {
    %c0_i32 = arith.constant 0 : i32
    %c0_i32_0 = arith.constant 0 : i32
    return %c0_i32, %arg0 : i32, i32
  }
}

</mosaic_0001>

<llo_original>
// kernel: tpu_custom_call.1
$region0: #{tpu_custom_call.1}
  #allocation0 [shape = 'u32[]', space=smem, size = 0x4, offset = 0x4, fixed_abs, tag = 'smem constant byte address 0x4 - core index']
  #allocation1 [shape = 'u32[144,128]{1,0:T(1,128)}', space=vmem, size = 0x12000, scoped, tag = 'internal scratch']
  %s0 = inlined_call_operand.hbm [shape: f32[32,256], index: 0, kind: input, shape index: {}]
  %s1 = inlined_call_operand.hbm [shape: f32[6,32,256], index: 1, kind: input, shape index: {}]
  %s2 = inlined_call_operand.hbm [shape: f32[6,256], index: 2, kind: input, shape index: {}]
  %s3 = inlined_call_operand.hbm [shape: f32[6,256], index: 3, kind: input, shape index: {}]
  %s4 = inlined_call_operand.hbm [shape: f32[1,256], index: 4, kind: output, shape index: {}]
  %s5 = sld [smem:[#allocation0]]
  $region65: #{tpu_custom_call.1} parent=0
    _
  %s7 = ssub.s32 1, %s5
  %s8 = scalar_select 0, %s7, %s5
  $region1: #{tpu_custom_call.1} parent=0
    #allocation2 [shape = 'u8[32768]{0}', space=vmem, size = 0x8000, scoped, tag = 'input window, operand 0']
    #allocation3 [shape = 's32[2]{0}', space=sflag, size = 0x8, scoped, tag = 'scoped memory for tpu_custom_call.1']
    #allocation4 [shape = 's32[2]{0}', space=sflag, size = 0x8, scoped, tag = 'scoped memory for tpu_custom_call.1']
    #allocation5 [shape = 'u8[196608]{0}', space=vmem, size = 0x30000, scoped, tag = 'input window, operand 1']
    #allocation6 [shape = 's32[2]{0}', space=sflag, size = 0x8, scoped, tag = 'scoped memory for tpu_custom_call.1']
    #allocation7 [shape = 'u8[8192]{0}', space=vmem, size = 0x2000, scoped, tag = 'input window, operand 2']
    #allocation8 [shape = 'u8[8192]{0}', space=vmem, size = 0x2000, scoped, tag = 'input window, operand 3']
    #allocation9 [shape = 's32[2]{0}', space=sflag, size = 0x8, scoped, tag = 'scoped memory for tpu_custom_call.1']
    #allocation10 [shape = 'u8[1024]{0}', space=vmem, size = 0x400, scoped, tag = 'output window, operand 0']
    %9 = vsyncpa [#allocation3], 0
    %s10 = scalar_lea.sflag [#allocation3], 1
    %11 = vsyncpa %s10, 0
    %12 = vsyncpa [#allocation6], 0
    %s13 = scalar_lea.sflag [#allocation6], 1
    %14 = vsyncpa %s13, 0
    %15 = vsyncpa [#allocation9], 0
    %s16 = scalar_lea.sflag [#allocation9], 1
    %17 = vsyncpa %s16, 0
    %18 = vsyncpa [#allocation4], 0
    %s19 = scalar_lea.sflag [#allocation4], 1
    %20 = vsyncpa %s19, 0
    loop: start=0, step=1, limit=4
    $region2: #{tpu_custom_call.1} parent=1 // loop_pre_header
      _
    $region3: #{tpu_custom_call.1} parent=1 // loop_header
      %s22 = sphi 0, %s26
      %p23 = scmp.ge.s32.totalorder %s22, 4
      %s32 = sphi 0, %s34
      %s35 = sphi 0, %s32
      %s36 = sphi 0, %s35
      %s52 = sphi 0, %s36
      %s58 = sphi 0, %s60
      %s61 = sphi 0, %s58
      %s62 = sphi 0, %s61
      %s78 = sphi 0, %s62
      %s84 = sphi 0, %s86
      %s87 = sphi 0, %s84
      %s88 = sphi 0, %s87
      %s104 = sphi 0, %s88
      %s110 = sphi 0, %s112
      %s113 = sphi 0, %s110
      %s114 = sphi 0, %s113
      %s130 = sphi 0, %s114
      %s136 = sphi 0, %s138
      %s139 = sphi 0, %s136
      %s140 = sphi 0, %s139
      %s156 = sphi 0, %s140
    $region4: #{tpu_custom_call.1} parent=1 // loop_header_branch
      %25 = sbr.rel (%p23) target = $region8
    $region5: #{tpu_custom_call.1} parent=1 // loop_body
      %s27 = ssub.s32 %s22, 1
      %s28 = ssub.s32 %s22, 2
      %s29 = sadd.s32 %s22, 1
      %s30 = ssub.s32 %s22, %s29
      %p31 = scmp.eq.s32.totalorder %s30, 0
      %s33 = sadd.s32 %s32, 1
      %s34 = scalar_select %p31, %s32, %s33
      %p37 = pneg %p31
      %p38 = scmp.eq.s32.totalorder %s22, 1
      %p39 = por %p37, %p38
      %p40 = scmp.ne.s32.totalorder %s32, %s35
      %p41 = scmp.eq.s32.totalorder %s22, 0
      %p42 = por %p40, %p41
      %p43 = scmp.ne.s32.totalorder %s32, %s35
      %p44 = scmp.eq.s32.totalorder %s27, 1
      %p45 = por %p43, %p44
      %p46 = scmp.ne.s32.totalorder %s35, %s36
      %p47 = scmp.eq.s32.totalorder %s27, 0
      %p48 = por %p46, %p47
      %p49 = scmp.ne.s32.totalorder %s35, %s36
      %p50 = scmp.eq.s32.totalorder %s28, 1
      %p51 = por %p49, %p50
      %p53 = scmp.ne.s32.totalorder %s36, %s52
      %p54 = scmp.eq.s32.totalorder %s28, 0
      %p55 = por %p53, %p54
      %s56 = ssub.s32 %s22, %s29
      %p57 = scmp.eq.s32.totalorder %s56, 0
      %s59 = sadd.s32 %s58, 1
      %s60 = scalar_select %p57, %s58, %s59
      %p63 = pneg %p57
      %p64 = scmp.eq.s32.totalorder %s22, 1
      %p65 = por %p63, %p64
      %p66 = scmp.ne.s32.totalorder %s58, %s61
      %p67 = scmp.eq.s32.totalorder %s22, 0
      %p68 = por %p66, %p67
      %p69 = scmp.ne.s32.totalorder %s58, %s61
      %p70 = scmp.eq.s32.totalorder %s27, 1
      %p71 = por %p69, %p70
      %p72 = scmp.ne.s32.totalorder %s61, %s62
      %p73 = scmp.eq.s32.totalorder %s27, 0
      %p74 = por %p72, %p73
      %p75 = scmp.ne.s32.totalorder %s61, %s62
      %p76 = scmp.eq.s32.totalorder %s28, 1
      %p77 = por %p75, %p76
      %p79 = scmp.ne.s32.totalorder %s62, %s78
      %p80 = scmp.eq.s32.totalorder %s28, 0
      %p81 = por %p79, %p80
      %s82 = ssub.s32 %s22, %s29
      %p83 = scmp.eq.s32.totalorder %s82, 0
      %s85 = sadd.s32 %s84, 1
      %s86 = scalar_select %p83, %s84, %s85
      %p89 = pneg %p83
      %p90 = scmp.eq.s32.totalorder %s22, 1
      %p91 = por %p89, %p90
      %p92 = scmp.ne.s32.totalorder %s84, %s87
      %p93 = scmp.eq.s32.totalorder %s22, 0
      %p94 = por %p92, %p93
      %p95 = scmp.ne.s32.totalorder %s84, %s87
      %p96 = scmp.eq.s32.totalorder %s27, 1
      %p97 = por %p95, %p96
      %p98 = scmp.ne.s32.totalorder %s87, %s88
      %p99 = scmp.eq.s32.totalorder %s27, 0
      %p100 = por %p98, %p99
      %p101 = scmp.ne.s32.totalorder %s87, %s88
      %p102 = scmp.eq.s32.totalorder %s28, 1
      %p103 = por %p101, %p102
      %p105 = scmp.ne.s32.totalorder %s88, %s104
      %p106 = scmp.eq.s32.totalorder %s28, 0
      %p107 = por %p105, %p106
      %s108 = ssub.s32 %s22, %s29
      %p109 = scmp.eq.s32.totalorder %s108, 0
      %s111 = sadd.s32 %s110, 1
      %s112 = scalar_select %p109, %s110, %s111
      %p115 = pneg %p109
      %p116 = scmp.eq.s32.totalorder %s22, 1
      %p117 = por %p115, %p116
      %p118 = scmp.ne.s32.totalorder %s110, %s113
      %p119 = scmp.eq.s32.totalorder %s22, 0
      %p120 = por %p118, %p119
      %p121 = scmp.ne.s32.totalorder %s110, %s113
      %p122 = scmp.eq.s32.totalorder %s27, 1
      %p123 = por %p121, %p122
      %p124 = scmp.ne.s32.totalorder %s113, %s114
      %p125 = scmp.eq.s32.totalorder %s27, 0
      %p126 = por %p124, %p125
      %p127 = scmp.ne.s32.totalorder %s113, %s114
      %p128 = scmp.eq.s32.totalorder %s28, 1
      %p129 = por %p127, %p128
      %p131 = scmp.ne.s32.totalorder %s114, %s130
      %p132 = scmp.eq.s32.totalorder %s28, 0
      %p133 = por %p131, %p132
      %s134 = ssub.s32 %s22, %s29
      %p135 = scmp.eq.s32.totalorder %s134, 0
      %s137 = sadd.s32 %s136, 1
      %s138 = scalar_select %p135, %s136, %s137
      %p141 = pneg %p135
      %p142 = scmp.eq.s32.totalorder %s22, 1
      %p143 = por %p141, %p142
      %p144 = scmp.ne.s32.totalorder %s136, %s139
      %p145 = scmp.eq.s32.totalorder %s22, 0
      %p146 = por %p144, %p145
      %p147 = scmp.ne.s32.totalorder %s136, %s139
      %p148 = scmp.eq.s32.totalorder %s27, 1
      %p149 = por %p147, %p148
      %p150 = scmp.ne.s32.totalorder %s139, %s140
      %p151 = scmp.eq.s32.totalorder %s27, 0
      %p152 = por %p150, %p151
      %p153 = scmp.ne.s32.totalorder %s139, %s140
      %p154 = scmp.eq.s32.totalorder %s28, 1
      %p155 = por %p153, %p154
      %p157 = scmp.ne.s32.totalorder %s140, %s156
      %p158 = scmp.eq.s32.totalorder %s28, 0
      %p159 = por %p157, %p158
      %p160 = scmp.le.s32.totalorder 1, %s22
      %p161 = scmp.lt.s32.totalorder %s22, 3
      %p162 = pnand %p160, %p161
      %p163 = pneg %p162
      // Predicated region
      $region9: #{tpu_custom_call.1} parent=5 // pred_check
        _
      $region10: #{tpu_custom_call.1} parent=5 // pred_check_branch
        %165 = sbr.rel (%p162) target = $region12
      $region11: #{tpu_custom_call.1} parent=5 // pred_region
        %s166 = ssub.s32 %s22, 1
      $region12: #{tpu_custom_call.1} parent=5 // pred_fallthru
        _
      %p167 = scmp.lt.s32.totalorder %s22, 2
      // Predicated region
      $region13: #{tpu_custom_call.1} parent=5 // pred_check
        %p168 = pneg %p167
      $region14: #{tpu_custom_call.1} parent=5 // pred_check_branch
        %170 = sbr.rel (%p168) target = $region16
      $region15: #{tpu_custom_call.1} parent=5 // pred_region
        // Predicated region
        $region17: #{tpu_custom_call.1} parent=15 // pred_check
          %p171 = pneg %p42
        $region18: #{tpu_custom_call.1} parent=15 // pred_check_branch
          %173 = sbr.rel (%p171) target = $region20
        $region19: #{tpu_custom_call.1} parent=15 // pred_region
          %s174 = sand.u32 %s32, 1
          %s175 = scalar_lea.sflag [#allocation3], %s174
          %s176 = sand.u32 %s32, 1
          %s177 = smul.addr %s176, 32
          %s178 = scalar_lea.vmem [#allocation2], %s177
          %s180 = ssub.s32 512, 512
          %181 = vsyncadd %s175, %s180
          %s182 = smul.addr %s22, 128
          %s183 = scalar_lea.hbm %s0, %s182
          %s184 = sshll.u32 %s178, 4
          %s185 = int_to_ptr.vmem [resolvable:$true] %s184
          %190 = dma.hbm_to_vmem [thread:$0]  %s183, 512, %s185, %s175, 256, 128, 8
        $region20: #{tpu_custom_call.1} parent=15 // pred_fallthru
          _
        // Predicated region
        $region21: #{tpu_custom_call.1} parent=15 // pred_check
          %p191 = pneg %p68
        $region22: #{tpu_custom_call.1} parent=15 // pred_check_branch
          %193 = sbr.rel (%p191) target = $region24
        $region23: #{tpu_custom_call.1} parent=15 // pred_region
          %s194 = sand.u32 %s22, 1
          %s195 = scalar_lea.sflag [#allocation6], %s194
          %s196 = sand.u32 %s58, 1
          %s197 = smul.addr %s196, 192
          %s198 = scalar_lea.vmem [#allocation5], %s197
          %s200 = ssub.s32 3072, 3072
          %201 = vsyncadd %s195, %s200
          %s202 = smul.addr %s22, 128
          %s203 = scalar_lea.hbm %s1, %s202
          %s204 = sshll.u32 %s198, 4
          %s205 = int_to_ptr.vmem [resolvable:$true] %s204
          %210 = dma.hbm_to_vmem [thread:$0]  %s203, 3072, %s205, %s195, 256, 128, 8
        $region24: #{tpu_custom_call.1} parent=15 // pred_fallthru
          _
        // Predicated region
        $region25: #{tpu_custom_call.1} parent=15 // pred_check
          %p211 = pneg %p94
        $region26: #{tpu_custom_call.1} parent=15 // pred_check_branch
          %213 = sbr.rel (%p211) target = $region28
        $region27: #{tpu_custom_call.1} parent=15 // pred_region
          %s214 = sand.u32 %s22, 1
          %s215 = scalar_lea.sflag [#allocation6], %s214
          %s216 = sand.u32 %s84, 1
          %s217 = smul.addr %s216, 8
          %s218 = scalar_lea.vmem [#allocation7], %s217
          %s220 = ssub.s32 128, 128
          %221 = vsyncadd %s215, %s220
          %s222 = smul.addr %s22, 128
          %s223 = scalar_lea.hbm %s2, %s222
          %s225 = sshll.u32 %s218, 4
          %s226 = int_to_ptr.vmem [resolvable:$true] %s225
          %228 = dma.hbm_to_vmem [thread:$0]  %s223, 128, %s226, %s215
        $region28: #{tpu_custom_call.1} parent=15 // pred_fallthru
          _
        // Predicated region
        $region29: #{tpu_custom_call.1} parent=15 // pred_check
          %p229 = pneg %p120
        $region30: #{tpu_custom_call.1} parent=15 // pred_check_branch
          %231 = sbr.rel (%p229) target = $region32
        $region31: #{tpu_custom_call.1} parent=15 // pred_region
          %s232 = sand.u32 %s110, 1
          %s233 = scalar_lea.sflag [#allocation9], %s232
          %s234 = sand.u32 %s110, 1
          %s235 = smul.addr %s234, 8
          %s236 = scalar_lea.vmem [#allocation8], %s235
          %s238 = ssub.s32 128, 128
          %239 = vsyncadd %s233, %s238
          %s240 = smul.addr %s22, 128
          %s241 = scalar_lea.hbm %s3, %s240
          %s243 = sshll.u32 %s236, 4
          %s244 = int_to_ptr.vmem [resolvable:$true] %s243
          %246 = dma.hbm_to_vmem [thread:$0]  %s241, 128, %s244, %s233
        $region32: #{tpu_custom_call.1} parent=15 // pred_fallthru
          _
      $region16: #{tpu_custom_call.1} parent=5 // pred_fallthru
        _
      %p247 = scmp.le.s32.totalorder 1, %s22
      %p248 = scmp.lt.s32.totalorder %s22, 3
      %p249 = pnand %p247, %p248
      %p250 = pneg %p249
      // Predicated region
      $region33: #{tpu_custom_call.1} parent=5 // pred_check
        _
      $region34: #{tpu_custom_call.1} parent=5 // pred_check_branch
        %252 = sbr.rel (%p249) target = $region36
      $region35: #{tpu_custom_call.1} parent=5 // pred_region
        %s253 = ssub.s32 %s22, 1
        %s254 = sand.u32 %s35, 1
        %s255 = scalar_lea.sflag [#allocation3], %s254
        %s256 = sand.u32 %s35, 1
        %s257 = smul.addr %s256, 32
        %s258 = scalar_lea.vmem [#allocation2], %s257
        // Predicated region
        $region37: #{tpu_custom_call.1} parent=35 // pred_check
          %p259 = pneg %p48
        $region38: #{tpu_custom_call.1} parent=35 // pred_check_branch
          %261 = sbr.rel (%p259) target = $region40
        $region39: #{tpu_custom_call.1} parent=35 // pred_region
          %262 = dma.done %s255, 512
        $region40: #{tpu_custom_call.1} parent=35 // pred_fallthru
          _
        %s263 = sand.u32 %s27, 1
        %s264 = scalar_lea.sflag [#allocation6], %s263
        %s265 = sand.u32 %s61, 1
        %s266 = smul.addr %s265, 192
        %s267 = scalar_lea.vmem [#allocation5], %s266
        // Predicated region
        $region41: #{tpu_custom_call.1} parent=35 // pred_check
          %p268 = pneg %p74
        $region42: #{tpu_custom_call.1} parent=35 // pred_check_branch
          %270 = sbr.rel (%p268) target = $region44
        $region43: #{tpu_custom_call.1} parent=35 // pred_region
          %271 = dma.done %s264, 3072
        $region44: #{tpu_custom_call.1} parent=35 // pred_fallthru
          _
        %s272 = sand.u32 %s27, 1
        %s273 = scalar_lea.sflag [#allocation6], %s272
        %s274 = sand.u32 %s87, 1
        %s275 = smul.addr %s274, 8
        %s276 = scalar_lea.vmem [#allocation7], %s275
        // Predicated region
        $region45: #{tpu_custom_call.1} parent=35 // pred_check
          %p277 = pneg %p100
        $region46: #{tpu_custom_call.1} parent=35 // pred_check_branch
          %279 = sbr.rel (%p277) target = $region48
        $region47: #{tpu_custom_call.1} parent=35 // pred_region
          %280 = dma.done %s273, 128
        $region48: #{tpu_custom_call.1} parent=35 // pred_fallthru
          _
        %s281 = sand.u32 %s113, 1
        %s282 = scalar_lea.sflag [#allocation9], %s281
        %s283 = sand.u32 %s113, 1
        %s284 = smul.addr %s283, 8
        %s285 = scalar_lea.vmem [#allocation8], %s284
        // Predicated region
        $region49: #{tpu_custom_call.1} parent=35 // pred_check
          %p286 = pneg %p126
        $region50: #{tpu_custom_call.1} parent=35 // pred_check_branch
          %288 = sbr.rel (%p286) target = $region52
        $region51: #{tpu_custom_call.1} parent=35 // pred_region
          %289 = dma.done %s282, 128
        $region52: #{tpu_custom_call.1} parent=35 // pred_fallthru
          _
        %s290 = sand.u32 %s35, 1
        %s291 = scalar_lea.sflag [#allocation3], %s290
        %s292 = sand.u32 %s35, 1
        %s293 = smul.addr %s292, 32
        %s294 = scalar_lea.vmem [#allocation2], %s293
        %p295 = pneg %p48
        %p296 = pneg %p45
        %s297 = sand.u32 %s27, 1
        %s298 = scalar_lea.sflag [#allocation6], %s297
        %s299 = sand.u32 %s61, 1
        %s300 = smul.addr %s299, 192
        %s301 = scalar_lea.vmem [#allocation5], %s300
        %p302 = pneg %p74
        %p303 = pneg %p71
        %s304 = sand.u32 %s27, 1
        %s305 = scalar_lea.sflag [#allocation6], %s304
        %s306 = sand.u32 %s87, 1
        %s307 = smul.addr %s306, 8
        %s308 = scalar_lea.vmem [#allocation7], %s307
        %p309 = pneg %p100
        %p310 = pneg %p97
        %s311 = sand.u32 %s113, 1
        %s312 = scalar_lea.sflag [#allocation9], %s311
        %s313 = sand.u32 %s113, 1
        %s314 = smul.addr %s313, 8
        %s315 = scalar_lea.vmem [#allocation8], %s314
        %p316 = pneg %p126
        %p317 = pneg %p123
        %p318 = pneg %p152
        %p319 = pneg %p149
        %s320 = sand.u32 %s139, 1
        %s321 = scalar_lea.sflag [#allocation4], %s320
        %s322 = sand.u32 %s139, 1
        %s323 = scalar_lea.vmem [#allocation10], %s322
        %v324 = vld [vmem:[%s258] sm:$0xff]
        %v325 = vld [vmem:[%s258 + $0x8] sm:$0xff]
        %v326 = vld [vmem:[%s258 + $0x10] sm:$0xff]
        %v327 = vld [vmem:[%s258 + $0x18] sm:$0xff]
        %v328 = vld [vmem:[%s276] sm:$0x3f]
        %v329 = vld [vmem:[%s285] sm:$0x3f]
        %v330 = vld [vmem:[%s267] sm:$0xff]
        %v331 = vld [vmem:[%s267 + $0x8] sm:$0xff]
        %v332 = vld [vmem:[%s267 + $0x10] sm:$0xff]
        %v333 = vld [vmem:[%s267 + $0x18] sm:$0xff]
        %v334 = vrot.slane %v330, 5
        %v335 = vrot.slane %v331, 5
        %v336 = vrot.slane %v332, 5
        %v337 = vrot.slane %v333, 5
        %v338 = vlaneseq
        %v339 = vshrl.u32 %v338, 7
        %vm340 = vcmp.lt.s32.totalorder %v339, 3
        %v341 = vsel %vm340, %v336, %v337
        %v342 = vsel %vm340, %v335, %v336
        %v343 = vsel %vm340, %v334, %v335
        %v344 = vsel %vm340, %v337, %v334
        %v345 = vlaneseq
        %v346 = vshrl.u32 %v345, 7
        %v347 = vsub.s32 0, %v346
        %v348 = vrot.slane %v328, %v347
        %v349 = vmul.f32 %v343, %v348
        %v350 = vmul.f32 %v342, %v348
        %v351 = vmul.f32 %v341, %v348
        %v352 = vmul.f32 %v344, %v348
        %v353 = vlaneseq
        %v354 = vshrl.u32 %v353, 7
        %v355 = vsub.s32 0, %v354
        %v356 = vrot.slane %v329, %v355
        %v357 = vadd.f32 %v349, %v356
        %v358 = vadd.f32 %v350, %v356
        %v359 = vadd.f32 %v351, %v356
        %v360 = vadd.f32 %v352, %v356
        %s361 = scalar_lea.vmem %s267, 32 [#allocation5]
        %v362 = vld [vmem:[%s361] sm:$0xff]
        %v363 = vld [vmem:[%s361 + $0x8] sm:$0xff]
        %v364 = vld [vmem:[%s361 + $0x10] sm:$0xff]
        %v365 = vld [vmem:[%s361 + $0x18] sm:$0xff]
        %v366 = vrot.slane %v362, 2
        %v367 = vrot.slane %v363, 2
        %v368 = vrot.slane %v364, 2
        %v369 = vrot.slane %v365, 2
        %vm370 = vcmp.lt.s32.totalorder %v339, 6
        %v371 = vsel %vm370, %v368, %v369
        %v372 = vsel %vm370, %v367, %v368
        %v373 = vsel %vm370, %v366, %v367
        %v374 = vsel %vm370, %v369, %v366
        %v375 = vlaneseq
        %v376 = vshrl.u32 %v375, 7
        %v377 = vsub.s32 1, %v376
        %v378 = vrot.slane %v328, %v377
        %v379 = vmul.f32 %v372, %v378
        %v380 = vmul.f32 %v371, %v378
        %v381 = vmul.f32 %v374, %v378
        %v382 = vmul.f32 %v373, %v378
        %v383 = vlaneseq
        %v384 = vshrl.u32 %v383, 7
        %v385 = vsub.s32 1, %v384
        %v386 = vrot.slane %v329, %v385
        %v387 = vadd.f32 %v379, %v386
        %v388 = vadd.f32 %v380, %v386
        %v389 = vadd.f32 %v381, %v386
        %v390 = vadd.f32 %v382, %v386
        %v391 = vmul.f32 %v357, %v387
        %v392 = vmul.f32 %v358, %v388
        %v393 = vmul.f32 %v359, %v389
        %v394 = vmul.f32 %v360, %v390
        %s395 = scalar_lea.vmem %s267, 64 [#allocation5]
        %v396 = vld [vmem:[%s395] sm:$0xff]
        %v397 = vld [vmem:[%s395 + $0x8] sm:$0xff]
        %v398 = vld [vmem:[%s395 + $0x10] sm:$0xff]
        %v399 = vld [vmem:[%s395 + $0x18] sm:$0xff]
        %v400 = vlaneseq
        %v401 = vshrl.u32 %v400, 7
        %v402 = vsub.s32 2, %v401
        %v403 = vrot.slane %v328, %v402
        %v404 = vmul.f32 %v398, %v403
        %v405 = vmul.f32 %v399, %v403
        %v406 = vmul.f32 %v396, %v403
        %v407 = vmul.f32 %v397, %v403
        %v408 = vlaneseq
        %v409 = vshrl.u32 %v408, 7
        %v410 = vsub.s32 2, %v409
        %v411 = vrot.slane %v329, %v410
        %v412 = vadd.f32 %v404, %v411
        %v413 = vadd.f32 %v405, %v411
        %v414 = vadd.f32 %v406, %v411
        %v415 = vadd.f32 %v407, %v411
        %v416 = vmul.f32 %v391, %v412
        %v417 = vmul.f32 %v392, %v413
        %v418 = vmul.f32 %v393, %v414
        %v419 = vmul.f32 %v394, %v415
        %s420 = scalar_lea.vmem %s267, 96 [#allocation5]
        %v421 = vld [vmem:[%s420] sm:$0xff]
        %v422 = vld [vmem:[%s420 + $0x8] sm:$0xff]
        %v423 = vld [vmem:[%s420 + $0x10] sm:$0xff]
        %v424 = vld [vmem:[%s420 + $0x18] sm:$0xff]
        %v425 = vrot.slane %v421, 5
        %v426 = vrot.slane %v422, 5
        %v427 = vrot.slane %v423, 5
        %v428 = vrot.slane %v424, 5
        %v429 = vsel %vm340, %v427, %v428
        %v430 = vsel %vm340, %v426, %v427
        %v431 = vsel %vm340, %v425, %v426
        %v432 = vsel %vm340, %v428, %v425
        %v433 = vlaneseq
        %v434 = vshrl.u32 %v433, 7
        %v435 = vsub.s32 3, %v434
        %v436 = vrot.slane %v328, %v435
        %v437 = vmul.f32 %v429, %v436
        %v438 = vmul.f32 %v432, %v436
        %v439 = vmul.f32 %v431, %v436
        %v440 = vmul.f32 %v430, %v436
        %v441 = vlaneseq
        %v442 = vshrl.u32 %v441, 7
        %v443 = vsub.s32 3, %v442
        %v444 = vrot.slane %v329, %v443
        %v445 = vadd.f32 %v437, %v444
        %v446 = vadd.f32 %v438, %v444
        %v447 = vadd.f32 %v439, %v444
        %v448 = vadd.f32 %v440, %v444
        %v449 = vmul.f32 %v416, %v445
        %v450 = vmul.f32 %v417, %v446
        %v451 = vmul.f32 %v418, %v447
        %v452 = vmul.f32 %v419, %v448
        %s453 = scalar_lea.vmem %s267, 128 [#allocation5]
        %v454 = vld [vmem:[%s453] sm:$0xff]
        %v455 = vld [vmem:[%s453 + $0x8] sm:$0xff]
        %v456 = vld [vmem:[%s453 + $0x10] sm:$0xff]
        %v457 = vld [vmem:[%s453 + $0x18] sm:$0xff]
        %v458 = vrot.slane %v454, 2
        %v459 = vrot.slane %v455, 2
        %v460 = vrot.slane %v456, 2
        %v461 = vrot.slane %v457, 2
        %v462 = vsel %vm370, %v460, %v461
        %v463 = vsel %vm370, %v459, %v460
        %v464 = vsel %vm370, %v458, %v459
        %v465 = vsel %vm370, %v461, %v458
        %v466 = vlaneseq
        %v467 = vshrl.u32 %v466, 7
        %v468 = vsub.s32 4, %v467
        %v469 = vrot.slane %v328, %v468
        %v470 = vmul.f32 %v465, %v469
        %v471 = vmul.f32 %v464, %v469
        %v472 = vmul.f32 %v463, %v469
        %v473 = vmul.f32 %v462, %v469
        %v474 = vlaneseq
        %v475 = vshrl.u32 %v474, 7
        %v476 = vsub.s32 4, %v475
        %v477 = vrot.slane %v329, %v476
        %v478 = vadd.f32 %v470, %v477
        %v479 = vadd.f32 %v471, %v477
        %v480 = vadd.f32 %v472, %v477
        %v481 = vadd.f32 %v473, %v477
        %v482 = vmul.f32 %v449, %v478
        %v483 = vmul.f32 %v450, %v479
        %v484 = vmul.f32 %v451, %v480
        %v485 = vmul.f32 %v452, %v481
        %s486 = scalar_lea.vmem %s267, 160 [#allocation5]
        %v487 = vld [vmem:[%s486] sm:$0xff]
        %v488 = vld [vmem:[%s486 + $0x8] sm:$0xff]
        %v489 = vld [vmem:[%s486 + $0x10] sm:$0xff]
        %v490 = vld [vmem:[%s486 + $0x18] sm:$0xff]
        %v491 = vlaneseq
        %v492 = vshrl.u32 %v491, 7
        %v493 = vsub.s32 5, %v492
        %v494 = vrot.slane %v328, %v493
        %v495 = vmul.f32 %v487, %v494
        %v496 = vmul.f32 %v488, %v494
        %v497 = vmul.f32 %v489, %v494
        %v498 = vmul.f32 %v490, %v494
        %v499 = vlaneseq
        %v500 = vshrl.u32 %v499, 7
        %v501 = vsub.s32 5, %v500
        %v502 = vrot.slane %v329, %v501
        %v503 = vadd.f32 %v495, %v502
        %v504 = vadd.f32 %v496, %v502
        %v505 = vadd.f32 %v497, %v502
        %v506 = vadd.f32 %v498, %v502
        %v507 = vmul.f32 %v482, %v503
        %v508 = vmul.f32 %v483, %v504
        %v509 = vmul.f32 %v484, %v505
        %v510 = vmul.f32 %v485, %v506
        %v511 = vmul.f32 %v507, %v324
        %v512 = vmul.f32 %v508, %v325
        %v513 = vmul.f32 %v509, %v326
        %v514 = vmul.f32 %v510, %v327
        %v515 = vadd.f32 %v511, %v512
        %v516 = vadd.f32 %v515, %v513
        %v517 = vadd.f32 %v516, %v514
        %v518 = vrot.slane %v517, 4
        %v519 = vadd.f32 %v517, %v518
        %v520 = vrot.slane %v519, 2
        %v521 = vadd.f32 %v519, %v520
        %v522 = vrot.slane %v521, 1
        %v523 = vadd.f32 %v521, %v522
        %524 = vst [vmem:[%s323] sm:$0x1] %v523
        %s525 = sand.u32 %s139, 1
        %s526 = scalar_lea.sflag [#allocation4], %s525
        %s527 = sand.u32 %s139, 1
        %s528 = scalar_lea.vmem [#allocation10], %s527
        // Predicated region
        $region53: #{tpu_custom_call.1} parent=35 // pred_check
          %p529 = pneg %p149
        $region54: #{tpu_custom_call.1} parent=35 // pred_check_branch
          %531 = sbr.rel (%p529) target = $region56
        $region55: #{tpu_custom_call.1} parent=35 // pred_region
          %s533 = ssub.s32 16, 16
          %534 = vsyncadd %s526, %s533
          %s535 = smul.addr %s27, 16
          %s536 = scalar_lea.hbm %s4, %s535
          %s538 = sshll.u32 %s528, 4
          %s539 = int_to_ptr.vmem [resolvable:$true] %s538
          %541 = dma.vmem_to_hbm [thread:$0]  %s539, 16, %s536, %s526
        $region56: #{tpu_custom_call.1} parent=35 // pred_fallthru
          _
      $region36: #{tpu_custom_call.1} parent=5 // pred_fallthru
        _
      %p542 = scmp.le.s32.totalorder 2, %s22
      // Predicated region
      $region57: #{tpu_custom_call.1} parent=5 // pred_check
        %p543 = pneg %p542
      $region58: #{tpu_custom_call.1} parent=5 // pred_check_branch
        %545 = sbr.rel (%p543) target = $region60
      $region59: #{tpu_custom_call.1} parent=5 // pred_region
        %s546 = ssub.s32 %s22, 2
        // Predicated region
        $region61: #{tpu_custom_call.1} parent=59 // pred_check
          %p547 = pneg %p155
        $region62: #{tpu_custom_call.1} parent=59 // pred_check_branch
          %549 = sbr.rel (%p547) target = $region64
        $region63: #{tpu_custom_call.1} parent=59 // pred_region
          %s550 = sand.u32 %s140, 1
          %s551 = scalar_lea.sflag [#allocation4], %s550
          %s552 = sand.u32 %s140, 1
          %s553 = scalar_lea.vmem [#allocation10], %s552
          %554 = dma.done %s551, 16
        $region64: #{tpu_custom_call.1} parent=59 // pred_fallthru
          _
      $region60: #{tpu_custom_call.1} parent=5 // pred_fallthru
        _
    $region6: #{tpu_custom_call.1} parent=1 // loop_footer
      %s26 = sadd.s32 1, %s22
    $region7: #{tpu_custom_call.1} parent=1 // loop_footer_branch
      %21 = sbr.rel target = $region3
    $region8: #{tpu_custom_call.1} parent=1 // loop_exit
      _
    %555 = vsyncpa [#allocation3], 1
    %s556 = scalar_lea.sflag [#allocation3], 1
    %557 = vsyncpa %s556, 1
    %558 = vsyncpa [#allocation6], 1
    %s559 = scalar_lea.sflag [#allocation6], 1
    %560 = vsyncpa %s559, 1
    %561 = vsyncpa [#allocation9], 1
    %s562 = scalar_lea.sflag [#allocation9], 1
    %563 = vsyncpa %s562, 1
    %564 = vsyncpa [#allocation4], 1
    %s565 = scalar_lea.sflag [#allocation4], 1
    %566 = vsyncpa %s565, 1

</llo_original>
